<compile_context>
chip_gen: v5e
topology: v5e:2x2
jax: 0.10.0
libtpu: 0.0.40
codegen_flags: <defaults>
</compile_context>

<pallas_src>
import functools

import jax
import jax.numpy as jnp
from jax.experimental import pallas as pl
from jax.experimental.pallas import tpu as pltpu

LANE = 128
NEG_INF = -1e30  # large-negative finite pad; keeps exp()/max math NaN-free


def classifier_kernel(vec_ref, w_ref, b_ref, out_ref):
    # vec_ref: (TB, D)   w_ref: (D, Cpad)   b_ref: (1, Cpad)   out_ref: (TB, Cpad)
    #
    # MXU matmul at input dtype (f32 or bf16), f32 accumulate.
    logits = jnp.dot(vec_ref[...], w_ref[...], preferred_element_type=jnp.float32)
    logits = logits + b_ref[...].astype(jnp.float32)

    # Numerically stable log-softmax along dim=1, all in f32.
    # Padded lanes carry bias = NEG_INF (and zero weight columns), so they
    # contribute exp(~-1e30) == 0 to the sum and never win the max.
    m = jnp.max(logits, axis=1, keepdims=True)
    shifted = logits - m
    lse = jnp.log(jnp.sum(jnp.exp(shifted), axis=1, keepdims=True))
    out_ref[...] = (shifted - lse).astype(out_ref.dtype)


def prepare_classifier_params(weight, bias):
    """One-time preprocessing of nn.Linear params.

    weight: (num_classes, mem_dim)  ->  (mem_dim, Cpad)  lane-dense, transposed
    bias:   (num_classes,)          ->  (1, Cpad)        padded lanes = -1e30
    """
    C, D = weight.shape
    Cpad = ((C + LANE - 1) // LANE) * LANE
    w_t = jnp.zeros((D, Cpad), jnp.float32).at[:, :C].set(
        weight.T.astype(jnp.float32))
    b_p = jnp.full((1, Cpad), NEG_INF, jnp.float32).at[0, :C].set(
        bias.astype(jnp.float32))
    return w_t, b_p


@functools.partial(jax.jit, static_argnames=("num_classes", "block_b"))
def classifier_forward(vec, w_t, b_pad, *, num_classes, block_b=512):
    """vec: (B, mem_dim); w_t/b_pad from prepare_classifier_params."""
    B, D = vec.shape
    Cpad = w_t.shape[1]

    # Batch tile: multiple of 8 sublanes, capped at block_b rows (~tiny VMEM
    # footprint per step, fits v5e/v6e 128 MiB and v7x 64 MiB alike).
    tb = min(block_b, max(8, ((B + 7) // 8) * 8))
    Bp = ((B + tb - 1) // tb) * tb
    vec_p = vec if Bp == B else jnp.pad(vec, ((0, Bp - B), (0, 0)))

    out = pl.pallas_call(
        classifier_kernel,
        out_shape=jax.ShapeDtypeStruct((Bp, Cpad), jnp.float32),
        grid=(Bp // tb,),
        in_specs=[
            pl.BlockSpec((tb, D), lambda i: (i, 0)),    # streamed batch tiles
            pl.BlockSpec((D, Cpad), lambda i: (0, 0)),  # weight resident across grid
            pl.BlockSpec((1, Cpad), lambda i: (0, 0)),  # bias resident across grid
        ],
        out_specs=pl.BlockSpec((tb, Cpad), lambda i: (i, 0)),  # lane-dense store
        compiler_params=pltpu.CompilerParams(
            dimension_semantics=("parallel",),  # shards batch grid on v7x (2 TCs)
        ),
    )(vec_p, w_t, b_pad)

    return out[:B, :num_classes]


def init_classifier_params(key, mem_dim, num_classes):
    # nn.Linear default init: U(-1/sqrt(fan_in), 1/sqrt(fan_in))
    k_w, k_b = jax.random.split(key)
    bound = 1.0 / (mem_dim ** 0.5)
    weight = jax.random.uniform(
        k_w, (num_classes, mem_dim), jnp.float32, -bound, bound)
    bias = jax.random.uniform(
        k_b, (num_classes,), jnp.float32, -bound, bound)
    return weight, bias


if __name__ == "__main__":
    key = jax.random.PRNGKey(0)
    k_in, k_in2, k_params = jax.random.split(key, 3)

    mem_dim = 32
    num_classes = 5

    weight, bias = init_classifier_params(k_params, mem_dim, num_classes)
    w_t, b_pad = prepare_classifier_params(weight, bias)  # one-time preprocessing

    def reference(v):
        return jax.nn.log_softmax(v @ weight.T + bias, axis=1)

    # Case 1: sublane-aligned batch.
    vec = jax.random.normal(k_in, (8, mem_dim), jnp.float32)
    out = jax.block_until_ready(
        classifier_forward(vec, w_t, b_pad, num_classes=num_classes))
    assert out.shape == (8, num_classes)
    assert jnp.allclose(out, reference(vec), atol=1e-5), "mismatch vs reference (B=8)"

    # Case 2: ragged batch (exercises the batch-padding path).
    vec2 = jax.random.normal(k_in2, (11, mem_dim), jnp.float32)
    out2 = jax.block_until_ready(
        classifier_forward(vec2, w_t, b_pad, num_classes=num_classes))
    assert out2.shape == (11, num_classes)
    assert jnp.allclose(out2, reference(vec2), atol=1e-5), "mismatch vs reference (B=11)"

    print("KERNEL_OK")
</pallas_src>

<mosaic_0001>
module attributes {stable_mosaic.version = 11 : i64} {
  func.func @classifier_kernel(%arg0: i32, %arg1: memref<8x32xf32, #tpu.memory_space<vmem>>, %arg2: memref<32x128xf32, #tpu.memory_space<vmem>>, %arg3: memref<1x128xf32, #tpu.memory_space<vmem>>, %arg4: memref<8x128xf32, #tpu.memory_space<vmem>>) attributes {dimension_semantics = [#tpu.dimension_semantics<parallel>], iteration_bounds = array<i64: 1>, scalar_prefetch = 0 : i64, scratch_operands = 0 : i64, tpu.core_type = #tpu.core_type<tc>, window_params = [{transform_indices = @transform_0, window_bounds = array<i64: 8, 32>}, {pipeline_mode = #tpu.pipeline_mode<synchronous>, transform_indices = @transform_1, window_bounds = array<i64: 32, 128>}, {pipeline_mode = #tpu.pipeline_mode<synchronous>, transform_indices = @transform_2, window_bounds = array<i64: 1, 128>}, {transform_indices = @transform_3, window_bounds = array<i64: 8, 128>}]} {
    %c0 = arith.constant 0 : index
    %c0_0 = arith.constant 0 : index
    %0 = vector.load %arg1[%c0, %c0_0] : memref<8x32xf32, #tpu.memory_space<vmem>>, vector<8x32xf32>
    %c0_1 = arith.constant 0 : index
    %c0_2 = arith.constant 0 : index
    %1 = vector.load %arg2[%c0_1, %c0_2] : memref<32x128xf32, #tpu.memory_space<vmem>>, vector<32x128xf32>
    %cst = arith.constant dense<0.000000e+00> : vector<8x128xf32>
    %2 = tpu.matmul %0, %1, %cst {dimension_numbers = #tpu.dot_dimension_numbers<[1], [0], [0], [1], [0, 0, 1, 1], [], []>} : vector<8x32xf32>, vector<32x128xf32>, vector<8x128xf32> -> vector<8x128xf32>
    %c0_3 = arith.constant 0 : index
    %c0_4 = arith.constant 0 : index
    %3 = vector.load %arg3[%c0_3, %c0_4] : memref<1x128xf32, #tpu.memory_space<vmem>>, vector<1x128xf32>
    %4 = vector.broadcast %3 : vector<1x128xf32> to vector<8x128xf32>
    %5 = arith.addf %2, %4 : vector<8x128xf32>
    %cst_5 = arith.constant dense<0xFF800000> : vector<8xf32>
    %6 = vector.multi_reduction <maximumf>, %5, %cst_5 [1] : vector<8x128xf32> to vector<8xf32>
    %7 = vector.shape_cast %6 : vector<8xf32> to vector<8x1xf32>
    %8 = vector.broadcast %7 : vector<8x1xf32> to vector<8x128xf32>
    %9 = arith.subf %5, %8 : vector<8x128xf32>
    %10 = math.exp %9 : vector<8x128xf32>
    %cst_6 = arith.constant dense<0.000000e+00> : vector<8xf32>
    %11 = vector.multi_reduction <add>, %10, %cst_6 [1] : vector<8x128xf32> to vector<8xf32>
    %12 = vector.shape_cast %11 : vector<8xf32> to vector<8x1xf32>
    %13 = math.log %12 : vector<8x1xf32>
    %14 = vector.broadcast %13 : vector<8x1xf32> to vector<8x128xf32>
    %15 = arith.subf %9, %14 : vector<8x128xf32>
    %c0_7 = arith.constant 0 : index
    %c0_8 = arith.constant 0 : index
    %16 = vector.load %arg4[%c0_7, %c0_8] : memref<8x128xf32, #tpu.memory_space<vmem>>, vector<8x128xf32>
    tpu.vector_store %arg4[%c0_7, %c0_8], %15 {strides = array<i32>} : memref<8x128xf32, #tpu.memory_space<vmem>>, vector<8x128xf32>,
    return
  }
  func.func @transform_0(%arg0: i32) -> (i32, i32) {
    %c0_i32 = arith.constant 0 : i32
    %c0_i32_0 = arith.constant 0 : i32
    return %arg0, %c0_i32 : i32, i32
  }
  func.func @transform_1(%arg0: i32) -> (i32, i32) {
    %c0_i32 = arith.constant 0 : i32
    %c0_i32_0 = arith.constant 0 : i32
    %c0_i32_1 = arith.constant 0 : i32
    return %c0_i32, %c0_i32_0 : i32, i32
  }
  func.func @transform_2(%arg0: i32) -> (i32, i32) {
    %c0_i32 = arith.constant 0 : i32
    %c0_i32_0 = arith.constant 0 : i32
    %c0_i32_1 = arith.constant 0 : i32
    return %c0_i32, %c0_i32_0 : i32, i32
  }
  func.func @transform_3(%arg0: i32) -> (i32, i32) {
    %c0_i32 = arith.constant 0 : i32
    %c0_i32_0 = arith.constant 0 : i32
    return %arg0, %c0_i32 : i32, i32
  }
}

</mosaic_0001>

<llo_original>
// kernel: classifier_forward.1
$region0: #{classifier_forward.1}
  #allocation0 [shape = 'u32[]', space=smem, size = 0x4, offset = 0x4, fixed_abs, tag = 'smem constant byte address 0x4 - core index']
  #allocation1 [shape = 'u32[72,128]{1,0:T(1,128)}', space=vmem, size = 0x9000, scoped, tag = 'internal scratch']
  %s0 = inlined_call_operand.hbm [shape: f32[8,32], index: 0, kind: input, shape index: {}]
  %s1 = inlined_call_operand.hbm [shape: f32[32,128], index: 1, kind: input, shape index: {}]
  %s2 = inlined_call_operand.vmem [shape: f32[1,128], index: 2, kind: input, shape index: {}]
  %s3 = inlined_call_operand.hbm [shape: f32[8,128], index: 3, kind: output, shape index: {}]
  %s4 = sld [smem:[#allocation0]]
  $region30: #{classifier_forward.1} parent=0
    _
  %s6 = ssub.s32 1, %s4
  %s7 = scalar_select 0, %s6, %s4
  $region1: #{classifier_forward.1} parent=0
    #allocation2 [shape = 'u8[4096]{0}', space=vmem, size = 0x1000, scoped, tag = 'input window, operand 0, single buffered']
    #allocation3 [shape = 's32[1]{0}', space=sflag, size = 0x4, scoped, tag = 'scoped memory for classifier_forward.1']
    #allocation4 [shape = 's32[1]{0}', space=sflag, size = 0x4, scoped, tag = 'scoped memory for classifier_forward.1']
    #allocation5 [shape = 'u8[16384]{0}', space=vmem, size = 0x4000, scoped, tag = 'input window, operand 1, single buffered']
    #allocation6 [shape = 's32[1]{0}', space=sflag, size = 0x4, scoped, tag = 'scoped memory for classifier_forward.1']
    #allocation7 [shape = 'u8[4096]{0}', space=vmem, size = 0x1000, scoped, tag = 'output window, operand 0, single buffered']
    %8 = vsyncpa [#allocation3], 0
    %9 = vsyncpa [#allocation6], 0
    %10 = vsyncpa [#allocation4], 0
    // Predicated region
    $region2: #{classifier_forward.1} parent=1 // pred_check
      _
    $region3: #{classifier_forward.1} parent=1 // pred_check_branch
      %12 = sbr.rel (0) target = $region5
    $region4: #{classifier_forward.1} parent=1 // pred_region
      %14 = vsyncadd [#allocation3], 0
      %s16 = sshll.u32 %s0, 4
      %s17 = int_to_ptr.hbm [resolvable:$true] %s16
      %s18 = sshll.u32 [#allocation2], 4
      %s19 = int_to_ptr.vmem [resolvable:$true] %s18
      %21 = dma.hbm_to_vmem [thread:$0]  %s17, 128, %s19, [#allocation3]
    $region5: #{classifier_forward.1} parent=1 // pred_fallthru
      _
    // Predicated region
    $region6: #{classifier_forward.1} parent=1 // pred_check
      _
    $region7: #{classifier_forward.1} parent=1 // pred_check_branch
      %23 = sbr.rel (0) target = $region9
    $region8: #{classifier_forward.1} parent=1 // pred_region
      %25 = vsyncadd [#allocation6], 0
      %s26 = sshll.u32 %s1, 4
      %s27 = int_to_ptr.hbm [resolvable:$true] %s26
      %s28 = sshll.u32 [#allocation5], 4
      %s29 = int_to_ptr.vmem [resolvable:$true] %s28
      %34 = dma.hbm_to_vmem [thread:$0]  %s27, 512, %s29, [#allocation6], 128, 128, 8
    $region9: #{classifier_forward.1} parent=1 // pred_fallthru
      _
    // Predicated region
    $region10: #{classifier_forward.1} parent=1 // pred_check
      _
    $region11: #{classifier_forward.1} parent=1 // pred_check_branch
      %36 = sbr.rel (0) target = $region13
    $region12: #{classifier_forward.1} parent=1 // pred_region
      _
    $region13: #{classifier_forward.1} parent=1 // pred_fallthru
      _
    // Predicated region
    $region14: #{classifier_forward.1} parent=1 // pred_check
      _
    $region15: #{classifier_forward.1} parent=1 // pred_check_branch
      %38 = sbr.rel (0) target = $region17
    $region16: #{classifier_forward.1} parent=1 // pred_region
      %40 = dma.done [#allocation3], 128
    $region17: #{classifier_forward.1} parent=1 // pred_fallthru
      _
    // Predicated region
    $region18: #{classifier_forward.1} parent=1 // pred_check
      _
    $region19: #{classifier_forward.1} parent=1 // pred_check_branch
      %42 = sbr.rel (0) target = $region21
    $region20: #{classifier_forward.1} parent=1 // pred_region
      %44 = dma.done [#allocation6], 512
    $region21: #{classifier_forward.1} parent=1 // pred_fallthru
      _
    %v45 = vld [vmem:[#allocation2] sm:$0xff]
    %v46 = vld [vmem:[#allocation5] sm:$0xff]
    %v47 = vld [vmem:[#allocation5 + $0x8] sm:$0xff]
    %v48 = vld [vmem:[#allocation5 + $0x10] sm:$0xff]
    %v49 = vld [vmem:[#allocation5 + $0x18] sm:$0xff]
    %v50 = vld [vmem:[%s2] sm:$0x1]
    %v52 = vperm.slane %v50, 0
    %vm54 = vcmask 261120
    %v56 = vsel %vm54, %v45, 0
    %58 = vmatpush.msra.mxu0 0.0
    %59 = vmatpush.msra.mxu0 0.0
    %60 = vmatpush.msra.mxu0 0.0
    %61 = vmatpush.msra.mxu0 0.0
    %62 = vmatpush.msra.mxu0 0.0
    %63 = vmatpush.msra.mxu0 0.0
    %64 = vmatpush.msra.mxu0 0.0
    %65 = vmatpush.msra.mxu0 0.0
    %66 = vmatpush.msra.mxu0 0.0
    %67 = vmatpush.msra.mxu0 0.0
    %68 = vmatpush.msra.mxu0 0.0
    %69 = vmatpush.msra.mxu0 0.0
    %70 = vmatpush.msra.mxu0 %v49
    %71 = vmatpush.msra.mxu0 %v48
    %72 = vmatpush.msra.mxu0 %v47
    %73 = vmatpush.msra.mxu0 %v46
    %74 = vmatmul.f32.gmra.mxu0 %v56
    %v75 = vpop.f32.mrf.mxu0
    %v76 = vadd.f32 %v52, %v75
    %77 = vdwg.mxu0
    %78 = vmax.xlane.f32.xlu0 %v76
    %v79 = vpop.xlane.xlu0 %78
    %v80 = vsub.f32 %v76, %v79
    %v81 = vmul.f32 %v80, 1.442695
    %v82 = vpow.pop %v81
    %83 = vadd.xlane.f32.xlu0 %v82
    %v84 = vpop.xlane.xlu0 %83
    %v85 = vlog2.pop %v84
    %v86 = vmul.f32 %v85, 0.6931472
    %v87 = vsub.f32 %v80, %v86
    %88 = vst [vmem:[#allocation7] sm:$0xff] %v87
    // Predicated region
    $region22: #{classifier_forward.1} parent=1 // pred_check
      _
    $region23: #{classifier_forward.1} parent=1 // pred_check_branch
      %90 = sbr.rel (0) target = $region25
    $region24: #{classifier_forward.1} parent=1 // pred_region
      %92 = vsyncadd [#allocation4], 0
      %s94 = sshll.u32 [#allocation7], 4
      %s95 = int_to_ptr.vmem [resolvable:$true] %s94
      %s96 = sshll.u32 %s3, 4
      %s97 = int_to_ptr.hbm [resolvable:$true] %s96
      %99 = dma.vmem_to_hbm [thread:$0]  %s95, 128, %s97, [#allocation4]
    $region25: #{classifier_forward.1} parent=1 // pred_fallthru
      _
    // Predicated region
    $region26: #{classifier_forward.1} parent=1 // pred_check
      _
    $region27: #{classifier_forward.1} parent=1 // pred_check_branch
      %101 = sbr.rel (0) target = $region29
    $region28: #{classifier_forward.1} parent=1 // pred_region
      %103 = dma.done [#allocation4], 128
    $region29: #{classifier_forward.1} parent=1 // pred_fallthru
      _
    %104 = vsyncpa [#allocation3], 1
    %105 = vsyncpa [#allocation6], 1
    %106 = vsyncpa [#allocation4], 1

</llo_original>
